<compile_context>
chip_gen: v6e
topology: v6e:2x2x1
jax: 0.10.0
libtpu: 0.0.40
codegen_flags: <defaults>
</compile_context>

<pallas_src>
import math

import numpy as np
import jax
import jax.numpy as jnp
from jax.experimental import pallas as pl
from jax.experimental.pallas import tpu as pltpu


# ---------------------------------------------------------------------------
# Padding helpers (faithful JAX ports of the PyTorch helpers; static shapes)
# ---------------------------------------------------------------------------
def get_extra_padding_for_conv1d(length, kernel_size, stride, padding_total):
    # Integer ceil-div (PyTorch helper uses float math; this avoids rounding
    # issues at very large lengths, same result otherwise).
    num = length - kernel_size + padding_total
    n_frames_ceil = -(-num // stride) + 1
    ideal_length = (n_frames_ceil - 1) * stride + (kernel_size - padding_total)
    return int(ideal_length - length)


def pad2d_jax(x, paddings, mode="zero", value=0.0):
    # paddings = ((time_before, time_after), (freq_before, freq_after))
    (pt_b, pt_a), (pf_b, pf_a) = paddings
    assert min(pt_b, pt_a) >= 0 and min(pf_b, pf_a) >= 0
    freq_len, time_len = x.shape[-2], x.shape[-1]
    if mode == "reflect":
        max_time_pad, max_freq_pad = max(pt_b, pt_a), max(pf_b, pf_a)
        extra_time_pad = max_time_pad - time_len + 1 if time_len <= max_time_pad else 0
        extra_freq_pad = max_freq_pad - freq_len + 1 if freq_len <= max_freq_pad else 0
        x = jnp.pad(x, ((0, 0), (0, 0), (0, extra_freq_pad), (0, extra_time_pad)))
        padded = jnp.pad(
            x, ((0, 0), (0, 0), (pf_b, pf_a), (pt_b, pt_a)), mode="reflect"
        )
        freq_end = padded.shape[-2] - extra_freq_pad
        time_end = padded.shape[-1] - extra_time_pad
        return padded[..., :freq_end, :time_end]
    else:
        return jnp.pad(
            x, ((0, 0), (0, 0), (pf_b, pf_a), (pt_b, pt_a)), constant_values=value
        )


# ---------------------------------------------------------------------------
# Pallas kernel: KH*KW accumulating MXU matmuls per batch element
# ---------------------------------------------------------------------------
def _make_tap_matmul_kernel(tap_bases, nw):
    """tap_bases: static flat offsets (kh*DH*Tp + kw*DW); nw = Fo*Tp."""

    def kernel(x_ref, w_ref, b_ref, o_ref):
        # x_ref: (CIN_P, NXF) bf16  — flat padded activation for this batch
        # w_ref: (KH*KW, COUT, CIN_P) bf16 — resident across grid steps
        # b_ref: (COUT, 1) f32
        # o_ref: (COUT, NW) f32     — lane-dense spatial, COUT on sublanes
        acc = None
        for t, base in enumerate(tap_bases):          # static unroll (KH*KW taps)
            x_slab = x_ref[:, base:base + nw]          # (CIN_P, NW) static slice
            y = jnp.dot(w_ref[t], x_slab,              # bf16 x bf16 -> f32 acc
                        preferred_element_type=jnp.float32)
            acc = y if acc is None else acc + y
        o_ref[...] = acc + b_ref[...]                  # f32 bias epilogue
    return kernel


def conv2d_pallas(x_pad, weight, bias, dilation=(1, 1)):
    """VALID conv2d on an already-padded NCHW input, stride=1, groups=1."""
    B, CIN, Fp, Tp = x_pad.shape
    COUT, CIN_w, KH, KW = weight.shape
    assert CIN == CIN_w, "groups != 1 not supported"
    DH, DW = dilation
    Fo = Fp - (KH - 1) * DH
    To = Tp - (KW - 1) * DW
    NW = Fo * Tp                      # accumulator width (cols >= To are garbage)
    tail = (KW - 1) * DW              # guard so the last tap slab stays in bounds
    CIN_P = -(-CIN // 8) * 8          # pad contraction dim to a sublane multiple

    # Flat spatial layout (free reshape), pad CIN->CIN_P and the tiny tail,
    # cast operands to bf16 (single-pass MXU), keep accumulation in f32.
    x_flat = x_pad.reshape(B, CIN, Fp * Tp)
    x_flat = jnp.pad(x_flat, ((0, 0), (0, CIN_P - CIN), (0, tail)))
    x_flat = x_flat.astype(jnp.bfloat16)
    NXF = Fp * Tp + tail

    # (KH*KW, COUT, CIN_P): per-tap weight matrices, VMEM-resident.
    w_taps = jnp.transpose(weight, (2, 3, 0, 1)).reshape(KH * KW, COUT, CIN)
    w_taps = jnp.pad(w_taps, ((0, 0), (0, 0), (0, CIN_P - CIN))).astype(jnp.bfloat16)
    b_col = bias.reshape(COUT, 1).astype(jnp.float32)

    tap_bases = tuple(kh * DH * Tp + kw * DW
                      for kh in range(KH) for kw in range(KW))

    flops = 2 * B * COUT * CIN * KH * KW * Fo * To
    bytes_accessed = (B * CIN_P * NXF * 2 + KH * KW * COUT * CIN_P * 2
                      + COUT * 4 + B * COUT * NW * 4)

    out_flat = pl.pallas_call(
        _make_tap_matmul_kernel(tap_bases, NW),
        out_shape=jax.ShapeDtypeStruct((B, COUT, NW), jnp.float32),
        grid=(B,),
        in_specs=[
            pl.BlockSpec((None, CIN_P, NXF), lambda b: (b, 0, 0)),
            pl.BlockSpec((KH * KW, COUT, CIN_P), lambda b: (0, 0, 0)),
            pl.BlockSpec((COUT, 1), lambda b: (0, 0)),
        ],
        out_specs=pl.BlockSpec((None, COUT, NW), lambda b: (b, 0, 0)),
        compiler_params=pltpu.CompilerParams(
            dimension_semantics=("parallel",),       # both TCs on v7x
            vmem_limit_bytes=32 * 1024 * 1024,
        ),
        cost_estimate=pl.CostEstimate(
            flops=flops, transcendentals=0, bytes_accessed=bytes_accessed),
    )(x_flat, w_taps, b_col)

    # (B, COUT, Fo*Tp) -> (B, COUT, Fo, Tp) is a free reshape; drop the
    # (KW-1)*DW garbage columns per row (no transpose pass needed).
    out = out_flat.reshape(B, COUT, Fo, Tp)
    if To != Tp:
        out = out[..., :To]
    return out


# ---------------------------------------------------------------------------
# SConv2d forward (padding math + NormConv2d with norm='none')
# ---------------------------------------------------------------------------
def sconv2d_pad(x, kernel_size, stride, dilation, causal, pad_mode):
    B, C, F_, T = x.shape
    padding_total_list, extra_padding_list = [], []
    for i, (ks, st, dil) in enumerate(zip(kernel_size, stride, dilation)):
        padding_total = (ks - 1) * dil - (st - 1)
        if i == 0:
            extra_padding = 0
        else:
            extra_padding = get_extra_padding_for_conv1d(T, ks, st, padding_total)
        padding_total_list.append(padding_total)
        extra_padding_list.append(extra_padding)

    if causal:
        freq_after = padding_total_list[0] // 2
        freq_before = padding_total_list[0] - freq_after + extra_padding_list[0]
        time_after = extra_padding_list[1]
        time_before = padding_total_list[1]
    else:
        freq_after = padding_total_list[0] // 2
        freq_before = padding_total_list[0] - freq_after + extra_padding_list[0]
        time_after = padding_total_list[1] // 2
        time_before = padding_total_list[1] - time_after + extra_padding_list[1]

    return pad2d_jax(
        x, ((time_before, time_after), (freq_before, freq_after)), mode=pad_mode
    )


def sconv2d_forward(
    x,
    weight,
    bias,
    kernel_size=(3, 3),
    stride=(1, 1),
    dilation=(1, 1),
    causal=False,
    pad_mode="reflect",
):
    assert x.ndim == 4, x.shape
    assert stride == (1, 1), "strided conv not implemented in this kernel config"
    x_pad = sconv2d_pad(x, kernel_size, stride, dilation, causal, pad_mode)
    # norm='none' -> NormConv2d is just the conv
    return conv2d_pallas(x_pad, weight, bias, dilation=dilation)


# ---------------------------------------------------------------------------
if __name__ == "__main__":
    B, CIN, F_, T = 2, 4, 16, 16
    COUT, Kk = 8, 3

    key = jax.random.PRNGKey(0)
    kx, kw, kb = jax.random.split(key, 3)
    x = jax.random.normal(kx, (B, CIN, F_, T), dtype=jnp.float32)

    # Deterministic parameter init (mimics torch Conv2d uniform bounds)
    fan_in = CIN * Kk * Kk
    bound = 1.0 / math.sqrt(fan_in)
    weight = jax.random.uniform(kw, (COUT, CIN, Kk, Kk), jnp.float32, -bound, bound)
    bias = jax.random.uniform(kb, (COUT,), jnp.float32, -bound, bound)

    out = sconv2d_forward(x, weight, bias)
    out = jax.block_until_ready(out)
    assert out.shape == (B, COUT, F_, T), out.shape

    # Pure-JAX f32 reference (same padding path, XLA conv) as correctness check.
    x_pad_ref = sconv2d_pad(x, (Kk, Kk), (1, 1), (1, 1), False, "reflect")
    ref = jax.lax.conv_general_dilated(
        x_pad_ref,
        weight,
        window_strides=(1, 1),
        padding="VALID",
        rhs_dilation=(1, 1),
        dimension_numbers=("NCHW", "OIHW", "NCHW"),
        precision=jax.lax.Precision.HIGHEST,
    ) + bias[None, :, None, None]
    # Tolerance accounts for bf16 operand rounding (f32 accumulation keeps the
    # error ~O(sqrt(K) * 2^-8)); logical errors (wrong tap / padding / layout)
    # produce O(1) mismatches and still fail.
    np.testing.assert_allclose(np.asarray(out), np.asarray(ref), rtol=2e-2, atol=2e-2)

    print("KERNEL_OK")
</pallas_src>

<mosaic_0001>
module attributes {stable_mosaic.version = 11 : i64} {
  func.func @kernel(%arg0: i32, %arg1: memref<1x8x326xbf16, #tpu.memory_space<vmem>>, %arg2: memref<9x8x8xbf16, #tpu.memory_space<vmem>>, %arg3: memref<8x1xf32, #tpu.memory_space<vmem>>, %arg4: memref<1x8x288xf32, #tpu.memory_space<vmem>>) attributes {dimension_semantics = [#tpu.dimension_semantics<parallel>], iteration_bounds = array<i64: 2>, scalar_prefetch = 0 : i64, scratch_operands = 0 : i64, tpu.core_type = #tpu.core_type<tc>, window_params = [{transform_indices = @transform_0, window_bounds = array<i64: 1, 8, 326>}, {pipeline_mode = #tpu.pipeline_mode<synchronous>, transform_indices = @transform_1, window_bounds = array<i64: 9, 8, 8>}, {pipeline_mode = #tpu.pipeline_mode<synchronous>, transform_indices = @transform_2, window_bounds = array<i64: 8, 1>}, {transform_indices = @transform_3, window_bounds = array<i64: 1, 8, 288>}]} {
    %c0 = arith.constant 0 : index
    %c0_0 = arith.constant 0 : index
    %c0_1 = arith.constant 0 : index
    %0 = vector.load %arg1[%c0, %c0_0, %c0_1] : memref<1x8x326xbf16, #tpu.memory_space<vmem>>, vector<1x8x288xbf16>
    %1 = vector.shape_cast %0 : vector<1x8x288xbf16> to vector<8x288xbf16>
    %c0_2 = arith.constant 0 : index
    %c0_3 = arith.constant 0 : index
    %c0_4 = arith.constant 0 : index
    %2 = vector.load %arg2[%c0_2, %c0_3, %c0_4] : memref<9x8x8xbf16, #tpu.memory_space<vmem>>, vector<1x8x8xbf16>
    %3 = vector.shape_cast %2 : vector<1x8x8xbf16> to vector<8x8xbf16>
    %cst = arith.constant dense<0.000000e+00> : vector<8x288xf32>
    %4 = tpu.matmul %3, %1, %cst {dimension_numbers = #tpu.dot_dimension_numbers<[1], [0], [0], [1], [0, 0, 1, 1], [], []>} : vector<8x8xbf16>, vector<8x288xbf16>, vector<8x288xf32> -> vector<8x288xf32>
    %c0_5 = arith.constant 0 : index
    %c0_6 = arith.constant 0 : index
    %c1 = arith.constant 1 : index
    %5 = vector.load %arg1[%c0_5, %c0_6, %c1] : memref<1x8x326xbf16, #tpu.memory_space<vmem>>, vector<1x8x288xbf16>
    %6 = vector.shape_cast %5 : vector<1x8x288xbf16> to vector<8x288xbf16>
    %c1_7 = arith.constant 1 : index
    %c0_8 = arith.constant 0 : index
    %c0_9 = arith.constant 0 : index
    %7 = vector.load %arg2[%c1_7, %c0_8, %c0_9] : memref<9x8x8xbf16, #tpu.memory_space<vmem>>, vector<1x8x8xbf16>
    %8 = vector.shape_cast %7 : vector<1x8x8xbf16> to vector<8x8xbf16>
    %cst_10 = arith.constant dense<0.000000e+00> : vector<8x288xf32>
    %9 = tpu.matmul %8, %6, %cst_10 {dimension_numbers = #tpu.dot_dimension_numbers<[1], [0], [0], [1], [0, 0, 1, 1], [], []>} : vector<8x8xbf16>, vector<8x288xbf16>, vector<8x288xf32> -> vector<8x288xf32>
    %10 = arith.addf %4, %9 : vector<8x288xf32>
    %c0_11 = arith.constant 0 : index
    %c0_12 = arith.constant 0 : index
    %c2 = arith.constant 2 : index
    %11 = vector.load %arg1[%c0_11, %c0_12, %c2] : memref<1x8x326xbf16, #tpu.memory_space<vmem>>, vector<1x8x288xbf16>
    %12 = vector.shape_cast %11 : vector<1x8x288xbf16> to vector<8x288xbf16>
    %c2_13 = arith.constant 2 : index
    %c0_14 = arith.constant 0 : index
    %c0_15 = arith.constant 0 : index
    %13 = vector.load %arg2[%c2_13, %c0_14, %c0_15] : memref<9x8x8xbf16, #tpu.memory_space<vmem>>, vector<1x8x8xbf16>
    %14 = vector.shape_cast %13 : vector<1x8x8xbf16> to vector<8x8xbf16>
    %cst_16 = arith.constant dense<0.000000e+00> : vector<8x288xf32>
    %15 = tpu.matmul %14, %12, %cst_16 {dimension_numbers = #tpu.dot_dimension_numbers<[1], [0], [0], [1], [0, 0, 1, 1], [], []>} : vector<8x8xbf16>, vector<8x288xbf16>, vector<8x288xf32> -> vector<8x288xf32>
    %16 = arith.addf %10, %15 : vector<8x288xf32>
    %c0_17 = arith.constant 0 : index
    %c0_18 = arith.constant 0 : index
    %c18 = arith.constant 18 : index
    %17 = vector.load %arg1[%c0_17, %c0_18, %c18] : memref<1x8x326xbf16, #tpu.memory_space<vmem>>, vector<1x8x288xbf16>
    %18 = vector.shape_cast %17 : vector<1x8x288xbf16> to vector<8x288xbf16>
    %c3 = arith.constant 3 : index
    %c0_19 = arith.constant 0 : index
    %c0_20 = arith.constant 0 : index
    %19 = vector.load %arg2[%c3, %c0_19, %c0_20] : memref<9x8x8xbf16, #tpu.memory_space<vmem>>, vector<1x8x8xbf16>
    %20 = vector.shape_cast %19 : vector<1x8x8xbf16> to vector<8x8xbf16>
    %cst_21 = arith.constant dense<0.000000e+00> : vector<8x288xf32>
    %21 = tpu.matmul %20, %18, %cst_21 {dimension_numbers = #tpu.dot_dimension_numbers<[1], [0], [0], [1], [0, 0, 1, 1], [], []>} : vector<8x8xbf16>, vector<8x288xbf16>, vector<8x288xf32> -> vector<8x288xf32>
    %22 = arith.addf %16, %21 : vector<8x288xf32>
    %c0_22 = arith.constant 0 : index
    %c0_23 = arith.constant 0 : index
    %c19 = arith.constant 19 : index
    %23 = vector.load %arg1[%c0_22, %c0_23, %c19] : memref<1x8x326xbf16, #tpu.memory_space<vmem>>, vector<1x8x288xbf16>
    %24 = vector.shape_cast %23 : vector<1x8x288xbf16> to vector<8x288xbf16>
    %c4 = arith.constant 4 : index
    %c0_24 = arith.constant 0 : index
    %c0_25 = arith.constant 0 : index
    %25 = vector.load %arg2[%c4, %c0_24, %c0_25] : memref<9x8x8xbf16, #tpu.memory_space<vmem>>, vector<1x8x8xbf16>
    %26 = vector.shape_cast %25 : vector<1x8x8xbf16> to vector<8x8xbf16>
    %cst_26 = arith.constant dense<0.000000e+00> : vector<8x288xf32>
    %27 = tpu.matmul %26, %24, %cst_26 {dimension_numbers = #tpu.dot_dimension_numbers<[1], [0], [0], [1], [0, 0, 1, 1], [], []>} : vector<8x8xbf16>, vector<8x288xbf16>, vector<8x288xf32> -> vector<8x288xf32>
    %28 = arith.addf %22, %27 : vector<8x288xf32>
    %c0_27 = arith.constant 0 : index
    %c0_28 = arith.constant 0 : index
    %c20 = arith.constant 20 : index
    %29 = vector.load %arg1[%c0_27, %c0_28, %c20] : memref<1x8x326xbf16, #tpu.memory_space<vmem>>, vector<1x8x288xbf16>
    %30 = vector.shape_cast %29 : vector<1x8x288xbf16> to vector<8x288xbf16>
    %c5 = arith.constant 5 : index
    %c0_29 = arith.constant 0 : index
    %c0_30 = arith.constant 0 : index
    %31 = vector.load %arg2[%c5, %c0_29, %c0_30] : memref<9x8x8xbf16, #tpu.memory_space<vmem>>, vector<1x8x8xbf16>
    %32 = vector.shape_cast %31 : vector<1x8x8xbf16> to vector<8x8xbf16>
    %cst_31 = arith.constant dense<0.000000e+00> : vector<8x288xf32>
    %33 = tpu.matmul %32, %30, %cst_31 {dimension_numbers = #tpu.dot_dimension_numbers<[1], [0], [0], [1], [0, 0, 1, 1], [], []>} : vector<8x8xbf16>, vector<8x288xbf16>, vector<8x288xf32> -> vector<8x288xf32>
    %34 = arith.addf %28, %33 : vector<8x288xf32>
    %c0_32 = arith.constant 0 : index
    %c0_33 = arith.constant 0 : index
    %c36 = arith.constant 36 : index
    %35 = vector.load %arg1[%c0_32, %c0_33, %c36] : memref<1x8x326xbf16, #tpu.memory_space<vmem>>, vector<1x8x288xbf16>
    %36 = vector.shape_cast %35 : vector<1x8x288xbf16> to vector<8x288xbf16>
    %c6 = arith.constant 6 : index
    %c0_34 = arith.constant 0 : index
    %c0_35 = arith.constant 0 : index
    %37 = vector.load %arg2[%c6, %c0_34, %c0_35] : memref<9x8x8xbf16, #tpu.memory_space<vmem>>, vector<1x8x8xbf16>
    %38 = vector.shape_cast %37 : vector<1x8x8xbf16> to vector<8x8xbf16>
    %cst_36 = arith.constant dense<0.000000e+00> : vector<8x288xf32>
    %39 = tpu.matmul %38, %36, %cst_36 {dimension_numbers = #tpu.dot_dimension_numbers<[1], [0], [0], [1], [0, 0, 1, 1], [], []>} : vector<8x8xbf16>, vector<8x288xbf16>, vector<8x288xf32> -> vector<8x288xf32>
    %40 = arith.addf %34, %39 : vector<8x288xf32>
    %c0_37 = arith.constant 0 : index
    %c0_38 = arith.constant 0 : index
    %c37 = arith.constant 37 : index
    %41 = vector.load %arg1[%c0_37, %c0_38, %c37] : memref<1x8x326xbf16, #tpu.memory_space<vmem>>, vector<1x8x288xbf16>
    %42 = vector.shape_cast %41 : vector<1x8x288xbf16> to vector<8x288xbf16>
    %c7 = arith.constant 7 : index
    %c0_39 = arith.constant 0 : index
    %c0_40 = arith.constant 0 : index
    %43 = vector.load %arg2[%c7, %c0_39, %c0_40] : memref<9x8x8xbf16, #tpu.memory_space<vmem>>, vector<1x8x8xbf16>
    %44 = vector.shape_cast %43 : vector<1x8x8xbf16> to vector<8x8xbf16>
    %cst_41 = arith.constant dense<0.000000e+00> : vector<8x288xf32>
    %45 = tpu.matmul %44, %42, %cst_41 {dimension_numbers = #tpu.dot_dimension_numbers<[1], [0], [0], [1], [0, 0, 1, 1], [], []>} : vector<8x8xbf16>, vector<8x288xbf16>, vector<8x288xf32> -> vector<8x288xf32>
    %46 = arith.addf %40, %45 : vector<8x288xf32>
    %c0_42 = arith.constant 0 : index
    %c0_43 = arith.constant 0 : index
    %c38 = arith.constant 38 : index
    %47 = vector.load %arg1[%c0_42, %c0_43, %c38] : memref<1x8x326xbf16, #tpu.memory_space<vmem>>, vector<1x8x288xbf16>
    %48 = vector.shape_cast %47 : vector<1x8x288xbf16> to vector<8x288xbf16>
    %c8 = arith.constant 8 : index
    %c0_44 = arith.constant 0 : index
    %c0_45 = arith.constant 0 : index
    %49 = vector.load %arg2[%c8, %c0_44, %c0_45] : memref<9x8x8xbf16, #tpu.memory_space<vmem>>, vector<1x8x8xbf16>
    %50 = vector.shape_cast %49 : vector<1x8x8xbf16> to vector<8x8xbf16>
    %cst_46 = arith.constant dense<0.000000e+00> : vector<8x288xf32>
    %51 = tpu.matmul %50, %48, %cst_46 {dimension_numbers = #tpu.dot_dimension_numbers<[1], [0], [0], [1], [0, 0, 1, 1], [], []>} : vector<8x8xbf16>, vector<8x288xbf16>, vector<8x288xf32> -> vector<8x288xf32>
    %52 = arith.addf %46, %51 : vector<8x288xf32>
    %c0_47 = arith.constant 0 : index
    %c0_48 = arith.constant 0 : index
    %53 = vector.load %arg3[%c0_47, %c0_48] : memref<8x1xf32, #tpu.memory_space<vmem>>, vector<8x1xf32>
    %54 = vector.broadcast %53 : vector<8x1xf32> to vector<8x288xf32>
    %55 = arith.addf %52, %54 : vector<8x288xf32>
    %c0_49 = arith.constant 0 : index
    %c0_50 = arith.constant 0 : index
    %c0_51 = arith.constant 0 : index
    %56 = vector.load %arg4[%c0_49, %c0_50, %c0_51] : memref<1x8x288xf32, #tpu.memory_space<vmem>>, vector<1x8x288xf32>
    %57 = vector.shape_cast %56 : vector<1x8x288xf32> to vector<8x288xf32>
    %58 = vector.shape_cast %55 : vector<8x288xf32> to vector<1x8x288xf32>
    tpu.vector_store %arg4[%c0_49, %c0_50, %c0_51], %58 {strides = array<i32>} : memref<1x8x288xf32, #tpu.memory_space<vmem>>, vector<1x8x288xf32>,
    return
  }
  func.func @transform_0(%arg0: i32) -> (i32, i32, i32) {
    %c0_i32 = arith.constant 0 : i32
    %c0_i32_0 = arith.constant 0 : i32
    %c0_i32_1 = arith.constant 0 : i32
    return %arg0, %c0_i32, %c0_i32_0 : i32, i32, i32
  }
  func.func @transform_1(%arg0: i32) -> (i32, i32, i32) {
    %c0_i32 = arith.constant 0 : i32
    %c0_i32_0 = arith.constant 0 : i32
    %c0_i32_1 = arith.constant 0 : i32
    %c0_i32_2 = arith.constant 0 : i32
    return %c0_i32, %c0_i32_0, %c0_i32_1 : i32, i32, i32
  }
  func.func @transform_2(%arg0: i32) -> (i32, i32) {
    %c0_i32 = arith.constant 0 : i32
    %c0_i32_0 = arith.constant 0 : i32
    %c0_i32_1 = arith.constant 0 : i32
    return %c0_i32, %c0_i32_0 : i32, i32
  }
  func.func @transform_3(%arg0: i32) -> (i32, i32, i32) {
    %c0_i32 = arith.constant 0 : i32
    %c0_i32_0 = arith.constant 0 : i32
    %c0_i32_1 = arith.constant 0 : i32
    return %arg0, %c0_i32, %c0_i32_0 : i32, i32, i32
  }
}

</mosaic_0001>

<llo_original>
// kernel: tpu_custom_call.1
$region0: #{tpu_custom_call.1}
  #allocation0 [shape = 'u32[]', space=smem, size = 0x4, offset = 0x4, fixed_abs, tag = 'smem constant byte address 0x4 - core index']
  #allocation1 [shape = 'u32[144,128]{1,0:T(1,128)}', space=vmem, size = 0x12000, scoped, tag = 'internal scratch']
  %s0 = inlined_call_operand.vmem [shape: bf16[2,8,326], index: 0, kind: input, shape index: {}]
  %s1 = inlined_call_operand.vmem [shape: bf16[9,8,8], index: 1, kind: input, shape index: {}]
  %s2 = inlined_call_operand.vmem [shape: f32[8,1], index: 2, kind: input, shape index: {}]
  %s3 = inlined_call_operand.hbm [shape: f32[2,8,288], index: 3, kind: output, shape index: {}]
  %s4 = sld [smem:[#allocation0]]
  $region45: #{tpu_custom_call.1} parent=0
    _
  %s6 = ssub.s32 1, %s4
  %s7 = scalar_select 0, %s6, %s4
  $region1: #{tpu_custom_call.1} parent=0
    #allocation2 [shape = 'u8[24576]{0}', space=vmem, size = 0x6000, scoped, tag = 'output window, operand 0']
    #allocation3 [shape = 's32[2]{0}', space=sflag, size = 0x8, scoped, tag = 'scoped memory for tpu_custom_call.1']
    %8 = vsyncpa [#allocation3], 0
    %s9 = scalar_lea.sflag [#allocation3], 1
    %10 = vsyncpa %s9, 0
    loop: start=0, step=1, limit=4
    $region2: #{tpu_custom_call.1} parent=1 // loop_pre_header
      _
    $region3: #{tpu_custom_call.1} parent=1 // loop_header
      %s12 = sphi 0, %s16
      %p13 = scmp.ge.s32.totalorder %s12, 4
      %s22 = sphi 0, %s24
      %s25 = sphi 0, %s22
      %s26 = sphi 0, %s25
      %s42 = sphi 0, %s26
      %s46 = sphi 0, %s46
      %s48 = sphi 0, %s46
      %s49 = sphi 0, %s48
      %s63 = sphi 0, %s49
      %s67 = sphi 0, %s67
      %s69 = sphi 0, %s67
      %s70 = sphi 0, %s69
      %s84 = sphi 0, %s70
      %s90 = sphi 0, %s92
      %s93 = sphi 0, %s90
      %s94 = sphi 0, %s93
      %s110 = sphi 0, %s94
    $region4: #{tpu_custom_call.1} parent=1 // loop_header_branch
      %15 = sbr.rel (%p13) target = $region8
    $region5: #{tpu_custom_call.1} parent=1 // loop_body
      %s17 = ssub.s32 %s12, 1
      %s18 = ssub.s32 %s12, 2
      %s19 = sadd.s32 %s12, 1
      %s20 = ssub.s32 %s12, %s19
      %p21 = scmp.eq.s32.totalorder %s20, 0
      %s23 = sadd.s32 %s22, 1
      %s24 = scalar_select %p21, %s22, %s23
      %p27 = pneg %p21
      %p28 = scmp.eq.s32.totalorder %s12, 1
      %p29 = por %p27, %p28
      %p30 = scmp.ne.s32.totalorder %s22, %s25
      %p31 = scmp.eq.s32.totalorder %s12, 0
      %p32 = por %p30, %p31
      %p33 = scmp.ne.s32.totalorder %s22, %s25
      %p34 = scmp.eq.s32.totalorder %s17, 1
      %p35 = por %p33, %p34
      %p36 = scmp.ne.s32.totalorder %s25, %s26
      %p37 = scmp.eq.s32.totalorder %s17, 0
      %p38 = por %p36, %p37
      %p39 = scmp.ne.s32.totalorder %s25, %s26
      %p40 = scmp.eq.s32.totalorder %s18, 1
      %p41 = por %p39, %p40
      %p43 = scmp.ne.s32.totalorder %s26, %s42
      %p44 = scmp.eq.s32.totalorder %s18, 0
      %p45 = por %p43, %p44
      %s47 = sadd.s32 %s46, 1
      %p50 = scmp.eq.s32.totalorder %s12, 1
      %p51 = scmp.ne.s32.totalorder %s46, %s48
      %p52 = scmp.eq.s32.totalorder %s12, 0
      %p53 = por %p51, %p52
      %p54 = scmp.ne.s32.totalorder %s46, %s48
      %p55 = scmp.eq.s32.totalorder %s17, 1
      %p56 = por %p54, %p55
      %p57 = scmp.ne.s32.totalorder %s48, %s49
      %p58 = scmp.eq.s32.totalorder %s17, 0
      %p59 = por %p57, %p58
      %p60 = scmp.ne.s32.totalorder %s48, %s49
      %p61 = scmp.eq.s32.totalorder %s18, 1
      %p62 = por %p60, %p61
      %p64 = scmp.ne.s32.totalorder %s49, %s63
      %p65 = scmp.eq.s32.totalorder %s18, 0
      %p66 = por %p64, %p65
      %s68 = sadd.s32 %s67, 1
      %p71 = scmp.eq.s32.totalorder %s12, 1
      %p72 = scmp.ne.s32.totalorder %s67, %s69
      %p73 = scmp.eq.s32.totalorder %s12, 0
      %p74 = por %p72, %p73
      %p75 = scmp.ne.s32.totalorder %s67, %s69
      %p76 = scmp.eq.s32.totalorder %s17, 1
      %p77 = por %p75, %p76
      %p78 = scmp.ne.s32.totalorder %s69, %s70
      %p79 = scmp.eq.s32.totalorder %s17, 0
      %p80 = por %p78, %p79
      %p81 = scmp.ne.s32.totalorder %s69, %s70
      %p82 = scmp.eq.s32.totalorder %s18, 1
      %p83 = por %p81, %p82
      %p85 = scmp.ne.s32.totalorder %s70, %s84
      %p86 = scmp.eq.s32.totalorder %s18, 0
      %p87 = por %p85, %p86
      %s88 = ssub.s32 %s12, %s19
      %p89 = scmp.eq.s32.totalorder %s88, 0
      %s91 = sadd.s32 %s90, 1
      %s92 = scalar_select %p89, %s90, %s91
      %p95 = pneg %p89
      %p96 = scmp.eq.s32.totalorder %s12, 1
      %p97 = por %p95, %p96
      %p98 = scmp.ne.s32.totalorder %s90, %s93
      %p99 = scmp.eq.s32.totalorder %s12, 0
      %p100 = por %p98, %p99
      %p101 = scmp.ne.s32.totalorder %s90, %s93
      %p102 = scmp.eq.s32.totalorder %s17, 1
      %p103 = por %p101, %p102
      %p104 = scmp.ne.s32.totalorder %s93, %s94
      %p105 = scmp.eq.s32.totalorder %s17, 0
      %p106 = por %p104, %p105
      %p107 = scmp.ne.s32.totalorder %s93, %s94
      %p108 = scmp.eq.s32.totalorder %s18, 1
      %p109 = por %p107, %p108
      %p111 = scmp.ne.s32.totalorder %s94, %s110
      %p112 = scmp.eq.s32.totalorder %s18, 0
      %p113 = por %p111, %p112
      %p114 = scmp.le.s32.totalorder 1, %s12
      %p115 = scmp.lt.s32.totalorder %s12, 3
      %p116 = pnand %p114, %p115
      %p117 = pneg %p116
      // Predicated region
      $region9: #{tpu_custom_call.1} parent=5 // pred_check
        _
      $region10: #{tpu_custom_call.1} parent=5 // pred_check_branch
        %119 = sbr.rel (%p116) target = $region12
      $region11: #{tpu_custom_call.1} parent=5 // pred_region
        %s120 = ssub.s32 %s12, 1
        // Predicated region
        $region13: #{tpu_custom_call.1} parent=11 // pred_check
          %p121 = pneg %p59
        $region14: #{tpu_custom_call.1} parent=11 // pred_check_branch
          %123 = sbr.rel (%p121) target = $region16
        $region15: #{tpu_custom_call.1} parent=11 // pred_region
          _
        $region16: #{tpu_custom_call.1} parent=11 // pred_fallthru
          _
        // Predicated region
        $region17: #{tpu_custom_call.1} parent=11 // pred_check
          %p124 = pneg %p80
        $region18: #{tpu_custom_call.1} parent=11 // pred_check_branch
          %126 = sbr.rel (%p124) target = $region20
        $region19: #{tpu_custom_call.1} parent=11 // pred_region
          _
        $region20: #{tpu_custom_call.1} parent=11 // pred_fallthru
          _
      $region12: #{tpu_custom_call.1} parent=5 // pred_fallthru
        _
      %p127 = scmp.lt.s32.totalorder %s12, 2
      // Predicated region
      $region21: #{tpu_custom_call.1} parent=5 // pred_check
        %p128 = pneg %p127
      $region22: #{tpu_custom_call.1} parent=5 // pred_check_branch
        %130 = sbr.rel (%p128) target = $region24
      $region23: #{tpu_custom_call.1} parent=5 // pred_region
        // Predicated region
        $region25: #{tpu_custom_call.1} parent=23 // pred_check
          %p131 = pneg %p32
        $region26: #{tpu_custom_call.1} parent=23 // pred_check_branch
          %133 = sbr.rel (%p131) target = $region28
        $region27: #{tpu_custom_call.1} parent=23 // pred_region
          %p134 = scmp.lt.s32.totalorder %s12, 1
          %s135 = scalar_select %p134, %s12, 1
          %s136 = smul.addr %s135, 3
          %s137 = smul.addr %s136, 4
          %s138 = scalar_lea.vmem %s0, %s137
        $region28: #{tpu_custom_call.1} parent=23 // pred_fallthru
          _
      $region24: #{tpu_custom_call.1} parent=5 // pred_fallthru
        _
      %p139 = scmp.le.s32.totalorder 1, %s12
      %p140 = scmp.lt.s32.totalorder %s12, 3
      %p141 = pnand %p139, %p140
      %p142 = pneg %p141
      // Predicated region
      $region29: #{tpu_custom_call.1} parent=5 // pred_check
        _
      $region30: #{tpu_custom_call.1} parent=5 // pred_check_branch
        %144 = sbr.rel (%p141) target = $region32
      $region31: #{tpu_custom_call.1} parent=5 // pred_region
        %s145 = ssub.s32 %s12, 1
        %p146 = scmp.lt.s32.totalorder %s17, 1
        %s147 = scalar_select %p146, %s17, 1
        %s148 = smul.addr %s147, 3
        %s149 = smul.addr %s148, 4
        %s150 = scalar_lea.vmem %s0, %s149
        %p151 = pneg %p38
        %p152 = pneg %p35
        %p153 = pneg %p59
        %p154 = pneg %p56
        %p155 = pneg %p80
        %p156 = pneg %p77
        %p157 = pneg %p106
        %p158 = pneg %p103
        %s159 = sand.u32 %s93, 1
        %s160 = scalar_lea.sflag [#allocation3], %s159
        %s161 = sand.u32 %s93, 1
        %s162 = smul.addr %s161, 24
        %s163 = scalar_lea.vmem [#allocation2], %s162
        %p164 = scmp.lt.s32.totalorder %s17, 1
        %s165 = scalar_select %p164, %s17, 1
        %s166 = smul.addr %s165, 3
        %s167 = smul.addr %s166, 4
        %s168 = scalar_lea.vmem %s0, %s167
        %v170 = vld [vmem:[%s168] sm:$0xff]
        %v171 = vld [vmem:[%s168 + $0x8] sm:$0xf]
        %v172 = vld [vmem:[%s1] sm:$0xf]
        %s173 = scalar_lea.vmem %s1, 4
        %v174 = vld [vmem:[%s173] sm:$0xf]
        %v177 = vunpack.c.l.b16 %v170
        %v178 = vunpack.c.h.b16 %v170
        %v179 = vunpack.c.l.b16 %v171
        %v180 = vpack.c.b16 %v177, %v177
        %v181 = vpack.c.b16 %v178, %v178
        %v182 = vpack.c.b16 %v179, %v179
        %183 = vrot.lane.b32.xlu0 %v180, 127
        %v184 = vpop.permute.xlu0 %183
        %185 = vrot.lane.b32.xlu0 %v181, 127
        %v186 = vpop.permute.xlu0 %185
        %187 = vrot.lane.b32.xlu0 %v182, 127
        %v188 = vpop.permute.xlu0 %187
        %vm189 = vcmask 1039360
        %v190 = vsel %vm189, %v184, %v186
        %v191 = vsel %vm189, %v186, %v188
        %vm192 = vcmask 64512
        %v194 = vsel %vm192, %v174, 0
        %vm196 = vcmask 1043456
        %v198 = vsel %vm196, %v190, 0
        %v201 = vsel %vm196, %v191, 0
        %v204 = vsel %vm196, %v188, 0
        %206 = vmatprep.subr.bf16.mxu0 0
        %207 = vmatpush1.bf16.msra.mxu0 0
        %208 = vmatprep.subr.bf16.mxu0 0
        %209 = vmatpush1.bf16.msra.mxu0 0
        %210 = vmatprep.subr.bf16.mxu0 0
        %211 = vmatpush1.bf16.msra.mxu0 0
        %212 = vmatprep.subr.bf16.mxu0 0
        %213 = vmatpush1.bf16.msra.mxu0 0
        %214 = vmatprep.subr.bf16.mxu0 0
        %215 = vmatpush1.bf16.msra.mxu0 0
        %216 = vmatprep.subr.bf16.mxu0 0
        %217 = vmatpush1.bf16.msra.mxu0 0
        %218 = vmatprep.subr.bf16.mxu0 0
        %219 = vmatpush1.bf16.msra.mxu0 0
        %220 = vmatprep.subr.bf16.mxu0 %v201
        %221 = vmatpush1.bf16.msra.mxu0 %v198
        %222 = vmatprep.subr.bf16.mxu0 0
        %223 = vmatpush2.bf16.msra.mxu0 0
        %224 = vmatprep.subr.bf16.mxu0 0
        %225 = vmatpush2.bf16.msra.mxu0 0
        %226 = vmatprep.subr.bf16.mxu0 0
        %227 = vmatpush2.bf16.msra.mxu0 0
        %228 = vmatprep.subr.bf16.mxu0 0
        %229 = vmatpush2.bf16.msra.mxu0 0
        %230 = vmatprep.subr.bf16.mxu0 0
        %231 = vmatpush2.bf16.msra.mxu0 0
        %232 = vmatprep.subr.bf16.mxu0 0
        %233 = vmatpush2.bf16.msra.mxu0 0
        %234 = vmatprep.subr.bf16.mxu0 0
        %235 = vmatpush2.bf16.msra.mxu0 0
        %236 = vmatprep.subr.bf16.mxu0 0
        %237 = vmatpush2.bf16.msra.mxu0 0
        %238 = vmatprep.mubr.bf16.mxu0 0
        %239 = vmatmul.mubr.bf16.gmra.mxu0 %v194
        %v240 = vpop.f32.mrf.mxu0
        %v241 = vadd.f32 0.0, %v240
        %v242 = vpop.f32.mrf.mxu0
        %v243 = vadd.f32 0.0, %v242
        %v244 = vpop.f32.mrf.mxu0
        %v245 = vpop.f32.mrf.mxu0
        %246 = vdwg.mxu0
        %247 = vmatprep.subr.bf16.mxu0 0
        %248 = vmatpush1.bf16.msra.mxu0 0
        %249 = vmatprep.subr.bf16.mxu0 0
        %250 = vmatpush1.bf16.msra.mxu0 0
        %251 = vmatprep.subr.bf16.mxu0 0
        %252 = vmatpush1.bf16.msra.mxu0 0
        %253 = vmatprep.subr.bf16.mxu0 0
        %254 = vmatpush1.bf16.msra.mxu0 0
        %255 = vmatprep.subr.bf16.mxu0 0
        %256 = vmatpush1.bf16.msra.mxu0 0
        %257 = vmatprep.subr.bf16.mxu0 0
        %258 = vmatpush1.bf16.msra.mxu0 0
        %259 = vmatprep.subr.bf16.mxu0 0
        %260 = vmatpush1.bf16.msra.mxu0 0
        %261 = vmatprep.subr.bf16.mxu0 0
        %262 = vmatpush1.bf16.msra.mxu0 %v204
        %263 = vmatprep.subr.bf16.mxu0 0
        %264 = vmatpush2.bf16.msra.mxu0 0
        %265 = vmatprep.subr.bf16.mxu0 0
        %266 = vmatpush2.bf16.msra.mxu0 0
        %267 = vmatprep.subr.bf16.mxu0 0
        %268 = vmatpush2.bf16.msra.mxu0 0
        %269 = vmatprep.subr.bf16.mxu0 0
        %270 = vmatpush2.bf16.msra.mxu0 0
        %271 = vmatprep.subr.bf16.mxu0 0
        %272 = vmatpush2.bf16.msra.mxu0 0
        %273 = vmatprep.subr.bf16.mxu0 0
        %274 = vmatpush2.bf16.msra.mxu0 0
        %275 = vmatprep.subr.bf16.mxu0 0
        %276 = vmatpush2.bf16.msra.mxu0 0
        %277 = vmatprep.subr.bf16.mxu0 0
        %278 = vmatpush2.bf16.msra.mxu0 0
        %279 = vmatprep.mubr.bf16.mxu0 0
        %280 = vmatmul.mubr.bf16.gmra.mxu0 %v194
        %v281 = vpop.f32.mrf.mxu0
        %v282 = vadd.f32 0.0, %v281
        %v283 = vpop.f32.mrf.mxu0
        %v284 = vpop.f32.mrf.mxu0
        %v285 = vpop.f32.mrf.mxu0
        %286 = vdwg.mxu0
        %v288 = vsel %vm192, %v172, 0
        %v291 = vsel %vm196, %v180, 0
        %v294 = vsel %vm196, %v181, 0
        %v297 = vsel %vm196, %v182, 0
        %299 = vmatprep.subr.bf16.mxu0 0
        %300 = vmatpush1.bf16.msra.mxu0 0
        %301 = vmatprep.subr.bf16.mxu0 0
        %302 = vmatpush1.bf16.msra.mxu0 0
        %303 = vmatprep.subr.bf16.mxu0 0
        %304 = vmatpush1.bf16.msra.mxu0 0
        %305 = vmatprep.subr.bf16.mxu0 0
        %306 = vmatpush1.bf16.msra.mxu0 0
        %307 = vmatprep.subr.bf16.mxu0 0
        %308 = vmatpush1.bf16.msra.mxu0 0
        %309 = vmatprep.subr.bf16.mxu0 0
        %310 = vmatpush1.bf16.msra.mxu0 0
        %311 = vmatprep.subr.bf16.mxu0 0
        %312 = vmatpush1.bf16.msra.mxu0 0
        %313 = vmatprep.subr.bf16.mxu0 %v294
        %314 = vmatpush1.bf16.msra.mxu0 %v291
        %315 = vmatprep.subr.bf16.mxu0 0
        %316 = vmatpush2.bf16.msra.mxu0 0
        %317 = vmatprep.subr.bf16.mxu0 0
        %318 = vmatpush2.bf16.msra.mxu0 0
        %319 = vmatprep.subr.bf16.mxu0 0
        %320 = vmatpush2.bf16.msra.mxu0 0
        %321 = vmatprep.subr.bf16.mxu0 0
        %322 = vmatpush2.bf16.msra.mxu0 0
        %323 = vmatprep.subr.bf16.mxu0 0
        %324 = vmatpush2.bf16.msra.mxu0 0
        %325 = vmatprep.subr.bf16.mxu0 0
        %326 = vmatpush2.bf16.msra.mxu0 0
        %327 = vmatprep.subr.bf16.mxu0 0
        %328 = vmatpush2.bf16.msra.mxu0 0
        %329 = vmatprep.subr.bf16.mxu0 0
        %330 = vmatpush2.bf16.msra.mxu0 0
        %331 = vmatprep.mubr.bf16.mxu0 0
        %332 = vmatmul.mubr.bf16.gmra.mxu0 %v288
        %v333 = vpop.f32.mrf.mxu0
        %v334 = vadd.f32 %v241, %v333
        %v335 = vpop.f32.mrf.mxu0
        %v336 = vadd.f32 %v243, %v335
        %v337 = vpop.f32.mrf.mxu0
        %v338 = vpop.f32.mrf.mxu0
        %339 = vdwg.mxu0
        %340 = vmatprep.subr.bf16.mxu0 0
        %341 = vmatpush1.bf16.msra.mxu0 0
        %342 = vmatprep.subr.bf16.mxu0 0
        %343 = vmatpush1.bf16.msra.mxu0 0
        %344 = vmatprep.subr.bf16.mxu0 0
        %345 = vmatpush1.bf16.msra.mxu0 0
        %346 = vmatprep.subr.bf16.mxu0 0
        %347 = vmatpush1.bf16.msra.mxu0 0
        %348 = vmatprep.subr.bf16.mxu0 0
        %349 = vmatpush1.bf16.msra.mxu0 0
        %350 = vmatprep.subr.bf16.mxu0 0
        %351 = vmatpush1.bf16.msra.mxu0 0
        %352 = vmatprep.subr.bf16.mxu0 0
        %353 = vmatpush1.bf16.msra.mxu0 0
        %354 = vmatprep.subr.bf16.mxu0 0
        %355 = vmatpush1.bf16.msra.mxu0 %v297
        %356 = vmatprep.subr.bf16.mxu0 0
        %357 = vmatpush2.bf16.msra.mxu0 0
        %358 = vmatprep.subr.bf16.mxu0 0
        %359 = vmatpush2.bf16.msra.mxu0 0
        %360 = vmatprep.subr.bf16.mxu0 0
        %361 = vmatpush2.bf16.msra.mxu0 0
        %362 = vmatprep.subr.bf16.mxu0 0
        %363 = vmatpush2.bf16.msra.mxu0 0
        %364 = vmatprep.subr.bf16.mxu0 0
        %365 = vmatpush2.bf16.msra.mxu0 0
        %366 = vmatprep.subr.bf16.mxu0 0
        %367 = vmatpush2.bf16.msra.mxu0 0
        %368 = vmatprep.subr.bf16.mxu0 0
        %369 = vmatpush2.bf16.msra.mxu0 0
        %370 = vmatprep.subr.bf16.mxu0 0
        %371 = vmatpush2.bf16.msra.mxu0 0
        %372 = vmatprep.mubr.bf16.mxu0 0
        %373 = vmatmul.mubr.bf16.gmra.mxu0 %v288
        %v374 = vpop.f32.mrf.mxu0
        %v375 = vadd.f32 %v282, %v374
        %v376 = vpop.f32.mrf.mxu0
        %v377 = vpop.f32.mrf.mxu0
        %v378 = vpop.f32.mrf.mxu0
        %379 = vdwg.mxu0
        %s380 = scalar_lea.vmem %s1, 8
        %v381 = vld [vmem:[%s380] sm:$0xf]
        %382 = vrot.lane.b32.xlu0 %v180, 126
        %v383 = vpop.permute.xlu0 %382
        %384 = vrot.lane.b32.xlu0 %v181, 126
        %v385 = vpop.permute.xlu0 %384
        %386 = vrot.lane.b32.xlu0 %v182, 126
        %v387 = vpop.permute.xlu0 %386
        %vm388 = vcmask 1031168
        %v389 = vsel %vm388, %v383, %v385
        %v390 = vsel %vm388, %v385, %v387
        %v392 = vsel %vm192, %v381, 0
        %v395 = vsel %vm196, %v389, 0
        %v398 = vsel %vm196, %v390, 0
        %v401 = vsel %vm196, %v387, 0
        %403 = vmatprep.subr.bf16.mxu0 0
        %404 = vmatpush1.bf16.msra.mxu0 0
        %405 = vmatprep.subr.bf16.mxu0 0
        %406 = vmatpush1.bf16.msra.mxu0 0
        %407 = vmatprep.subr.bf16.mxu0 0
        %408 = vmatpush1.bf16.msra.mxu0 0
        %409 = vmatprep.subr.bf16.mxu0 0
        %410 = vmatpush1.bf16.msra.mxu0 0
        %411 = vmatprep.subr.bf16.mxu0 0
        %412 = vmatpush1.bf16.msra.mxu0 0
        %413 = vmatprep.subr.bf16.mxu0 0
        %414 = vmatpush1.bf16.msra.mxu0 0
        %415 = vmatprep.subr.bf16.mxu0 0
        %416 = vmatpush1.bf16.msra.mxu0 0
        %417 = vmatprep.subr.bf16.mxu0 %v398
        %418 = vmatpush1.bf16.msra.mxu0 %v395
        %419 = vmatprep.subr.bf16.mxu0 0
        %420 = vmatpush2.bf16.msra.mxu0 0
        %421 = vmatprep.subr.bf16.mxu0 0
        %422 = vmatpush2.bf16.msra.mxu0 0
        %423 = vmatprep.subr.bf16.mxu0 0
        %424 = vmatpush2.bf16.msra.mxu0 0
        %425 = vmatprep.subr.bf16.mxu0 0
        %426 = vmatpush2.bf16.msra.mxu0 0
        %427 = vmatprep.subr.bf16.mxu0 0
        %428 = vmatpush2.bf16.msra.mxu0 0
        %429 = vmatprep.subr.bf16.mxu0 0
        %430 = vmatpush2.bf16.msra.mxu0 0
        %431 = vmatprep.subr.bf16.mxu0 0
        %432 = vmatpush2.bf16.msra.mxu0 0
        %433 = vmatprep.subr.bf16.mxu0 0
        %434 = vmatpush2.bf16.msra.mxu0 0
        %435 = vmatprep.mubr.bf16.mxu0 0
        %436 = vmatmul.mubr.bf16.gmra.mxu0 %v392
        %v437 = vpop.f32.mrf.mxu0
        %v438 = vadd.f32 0.0, %v437
        %v439 = vpop.f32.mrf.mxu0
        %v440 = vadd.f32 0.0, %v439
        %v441 = vpop.f32.mrf.mxu0
        %v442 = vpop.f32.mrf.mxu0
        %443 = vdwg.mxu0
        %444 = vmatprep.subr.bf16.mxu0 0
        %445 = vmatpush1.bf16.msra.mxu0 0
        %446 = vmatprep.subr.bf16.mxu0 0
        %447 = vmatpush1.bf16.msra.mxu0 0
        %448 = vmatprep.subr.bf16.mxu0 0
        %449 = vmatpush1.bf16.msra.mxu0 0
        %450 = vmatprep.subr.bf16.mxu0 0
        %451 = vmatpush1.bf16.msra.mxu0 0
        %452 = vmatprep.subr.bf16.mxu0 0
        %453 = vmatpush1.bf16.msra.mxu0 0
        %454 = vmatprep.subr.bf16.mxu0 0
        %455 = vmatpush1.bf16.msra.mxu0 0
        %456 = vmatprep.subr.bf16.mxu0 0
        %457 = vmatpush1.bf16.msra.mxu0 0
        %458 = vmatprep.subr.bf16.mxu0 0
        %459 = vmatpush1.bf16.msra.mxu0 %v401
        %460 = vmatprep.subr.bf16.mxu0 0
        %461 = vmatpush2.bf16.msra.mxu0 0
        %462 = vmatprep.subr.bf16.mxu0 0
        %463 = vmatpush2.bf16.msra.mxu0 0
        %464 = vmatprep.subr.bf16.mxu0 0
        %465 = vmatpush2.bf16.msra.mxu0 0
        %466 = vmatprep.subr.bf16.mxu0 0
        %467 = vmatpush2.bf16.msra.mxu0 0
        %468 = vmatprep.subr.bf16.mxu0 0
        %469 = vmatpush2.bf16.msra.mxu0 0
        %470 = vmatprep.subr.bf16.mxu0 0
        %471 = vmatpush2.bf16.msra.mxu0 0
        %472 = vmatprep.subr.bf16.mxu0 0
        %473 = vmatpush2.bf16.msra.mxu0 0
        %474 = vmatprep.subr.bf16.mxu0 0
        %475 = vmatpush2.bf16.msra.mxu0 0
        %476 = vmatprep.mubr.bf16.mxu0 0
        %477 = vmatmul.mubr.bf16.gmra.mxu0 %v392
        %v478 = vpop.f32.mrf.mxu0
        %v479 = vadd.f32 0.0, %v478
        %v480 = vpop.f32.mrf.mxu0
        %v481 = vpop.f32.mrf.mxu0
        %v482 = vpop.f32.mrf.mxu0
        %483 = vdwg.mxu0
        %v484 = vadd.f32 %v334, %v438
        %v485 = vadd.f32 %v336, %v440
        %v486 = vadd.f32 %v375, %v479
        %s487 = scalar_lea.vmem %s1, 12
        %v488 = vld [vmem:[%s487] sm:$0xf]
        %489 = vrot.lane.b32.xlu0 %v180, 110
        %v490 = vpop.permute.xlu0 %489
        %491 = vrot.lane.b32.xlu0 %v181, 110
        %v492 = vpop.permute.xlu0 %491
        %493 = vrot.lane.b32.xlu0 %v182, 110
        %v494 = vpop.permute.xlu0 %493
        %vm495 = vcmask 900096
        %v496 = vsel %vm495, %v490, %v492
        %v497 = vsel %vm495, %v492, %v494
        %v499 = vsel %vm192, %v488, 0
        %v502 = vsel %vm196, %v496, 0
        %v505 = vsel %vm196, %v497, 0
        %v508 = vsel %vm196, %v494, 0
        %510 = vmatprep.subr.bf16.mxu0 0
        %511 = vmatpush1.bf16.msra.mxu0 0
        %512 = vmatprep.subr.bf16.mxu0 0
        %513 = vmatpush1.bf16.msra.mxu0 0
        %514 = vmatprep.subr.bf16.mxu0 0
        %515 = vmatpush1.bf16.msra.mxu0 0
        %516 = vmatprep.subr.bf16.mxu0 0
        %517 = vmatpush1.bf16.msra.mxu0 0
        %518 = vmatprep.subr.bf16.mxu0 0
        %519 = vmatpush1.bf16.msra.mxu0 0
        %520 = vmatprep.subr.bf16.mxu0 0
        %521 = vmatpush1.bf16.msra.mxu0 0
        %522 = vmatprep.subr.bf16.mxu0 0
        %523 = vmatpush1.bf16.msra.mxu0 0
        %524 = vmatprep.subr.bf16.mxu0 %v505
        %525 = vmatpush1.bf16.msra.mxu0 %v502
        %526 = vmatprep.subr.bf16.mxu0 0
        %527 = vmatpush2.bf16.msra.mxu0 0
        %528 = vmatprep.subr.bf16.mxu0 0
        %529 = vmatpush2.bf16.msra.mxu0 0
        %530 = vmatprep.subr.bf16.mxu0 0
        %531 = vmatpush2.bf16.msra.mxu0 0
        %532 = vmatprep.subr.bf16.mxu0 0
        %533 = vmatpush2.bf16.msra.mxu0 0
        %534 = vmatprep.subr.bf16.mxu0 0
        %535 = vmatpush2.bf16.msra.mxu0 0
        %536 = vmatprep.subr.bf16.mxu0 0
        %537 = vmatpush2.bf16.msra.mxu0 0
        %538 = vmatprep.subr.bf16.mxu0 0
        %539 = vmatpush2.bf16.msra.mxu0 0
        %540 = vmatprep.subr.bf16.mxu0 0
        %541 = vmatpush2.bf16.msra.mxu0 0
        %542 = vmatprep.mubr.bf16.mxu0 0
        %543 = vmatmul.mubr.bf16.gmra.mxu0 %v499
        %v544 = vpop.f32.mrf.mxu0
        %v545 = vadd.f32 0.0, %v544
        %v546 = vpop.f32.mrf.mxu0
        %v547 = vadd.f32 0.0, %v546
        %v548 = vpop.f32.mrf.mxu0
        %v549 = vpop.f32.mrf.mxu0
        %550 = vdwg.mxu0
        %551 = vmatprep.subr.bf16.mxu0 0
        %552 = vmatpush1.bf16.msra.mxu0 0
        %553 = vmatprep.subr.bf16.mxu0 0
        %554 = vmatpush1.bf16.msra.mxu0 0
        %555 = vmatprep.subr.bf16.mxu0 0
        %556 = vmatpush1.bf16.msra.mxu0 0
        %557 = vmatprep.subr.bf16.mxu0 0
        %558 = vmatpush1.bf16.msra.mxu0 0
        %559 = vmatprep.subr.bf16.mxu0 0
        %560 = vmatpush1.bf16.msra.mxu0 0
        %561 = vmatprep.subr.bf16.mxu0 0
        %562 = vmatpush1.bf16.msra.mxu0 0
        %563 = vmatprep.subr.bf16.mxu0 0
        %564 = vmatpush1.bf16.msra.mxu0 0
        %565 = vmatprep.subr.bf16.mxu0 0
        %566 = vmatpush1.bf16.msra.mxu0 %v508
        %567 = vmatprep.subr.bf16.mxu0 0
        %568 = vmatpush2.bf16.msra.mxu0 0
        %569 = vmatprep.subr.bf16.mxu0 0
        %570 = vmatpush2.bf16.msra.mxu0 0
        %571 = vmatprep.subr.bf16.mxu0 0
        %572 = vmatpush2.bf16.msra.mxu0 0
        %573 = vmatprep.subr.bf16.mxu0 0
        %574 = vmatpush2.bf16.msra.mxu0 0
        %575 = vmatprep.subr.bf16.mxu0 0
        %576 = vmatpush2.bf16.msra.mxu0 0
        %577 = vmatprep.subr.bf16.mxu0 0
        %578 = vmatpush2.bf16.msra.mxu0 0
        %579 = vmatprep.subr.bf16.mxu0 0
        %580 = vmatpush2.bf16.msra.mxu0 0
        %581 = vmatprep.subr.bf16.mxu0 0
        %582 = vmatpush2.bf16.msra.mxu0 0
        %583 = vmatprep.mubr.bf16.mxu0 0
        %584 = vmatmul.mubr.bf16.gmra.mxu0 %v499
        %v585 = vpop.f32.mrf.mxu0
        %v586 = vadd.f32 0.0, %v585
        %v587 = vpop.f32.mrf.mxu0
        %v588 = vpop.f32.mrf.mxu0
        %v589 = vpop.f32.mrf.mxu0
        %590 = vdwg.mxu0
        %v591 = vadd.f32 %v484, %v545
        %v592 = vadd.f32 %v485, %v547
        %v593 = vadd.f32 %v486, %v586
        %s594 = scalar_lea.vmem %s1, 16
        %v595 = vld [vmem:[%s594] sm:$0xf]
        %596 = vrot.lane.b32.xlu0 %v180, 109
        %v597 = vpop.permute.xlu0 %596
        %598 = vrot.lane.b32.xlu0 %v181, 109
        %v599 = vpop.permute.xlu0 %598
        %600 = vrot.lane.b32.xlu0 %v182, 109
        %v601 = vpop.permute.xlu0 %600
        %vm602 = vcmask 891904
        %v603 = vsel %vm602, %v597, %v599
        %v604 = vsel %vm602, %v599, %v601
        %v606 = vsel %vm192, %v595, 0
        %v609 = vsel %vm196, %v603, 0
        %v612 = vsel %vm196, %v604, 0
        %v615 = vsel %vm196, %v601, 0
        %617 = vmatprep.subr.bf16.mxu0 0
        %618 = vmatpush1.bf16.msra.mxu0 0
        %619 = vmatprep.subr.bf16.mxu0 0
        %620 = vmatpush1.bf16.msra.mxu0 0
        %621 = vmatprep.subr.bf16.mxu0 0
        %622 = vmatpush1.bf16.msra.mxu0 0
        %623 = vmatprep.subr.bf16.mxu0 0
        %624 = vmatpush1.bf16.msra.mxu0 0
        %625 = vmatprep.subr.bf16.mxu0 0
        %626 = vmatpush1.bf16.msra.mxu0 0
        %627 = vmatprep.subr.bf16.mxu0 0
        %628 = vmatpush1.bf16.msra.mxu0 0
        %629 = vmatprep.subr.bf16.mxu0 0
        %630 = vmatpush1.bf16.msra.mxu0 0
        %631 = vmatprep.subr.bf16.mxu0 %v612
        %632 = vmatpush1.bf16.msra.mxu0 %v609
        %633 = vmatprep.subr.bf16.mxu0 0
        %634 = vmatpush2.bf16.msra.mxu0 0
        %635 = vmatprep.subr.bf16.mxu0 0
        %636 = vmatpush2.bf16.msra.mxu0 0
        %637 = vmatprep.subr.bf16.mxu0 0
        %638 = vmatpush2.bf16.msra.mxu0 0
        %639 = vmatprep.subr.bf16.mxu0 0
        %640 = vmatpush2.bf16.msra.mxu0 0
        %641 = vmatprep.subr.bf16.mxu0 0
        %642 = vmatpush2.bf16.msra.mxu0 0
        %643 = vmatprep.subr.bf16.mxu0 0
        %644 = vmatpush2.bf16.msra.mxu0 0
        %645 = vmatprep.subr.bf16.mxu0 0
        %646 = vmatpush2.bf16.msra.mxu0 0
        %647 = vmatprep.subr.bf16.mxu0 0
        %648 = vmatpush2.bf16.msra.mxu0 0
        %649 = vmatprep.mubr.bf16.mxu0 0
        %650 = vmatmul.mubr.bf16.gmra.mxu0 %v606
        %v651 = vpop.f32.mrf.mxu0
        %v652 = vadd.f32 0.0, %v651
        %v653 = vpop.f32.mrf.mxu0
        %v654 = vadd.f32 0.0, %v653
        %v655 = vpop.f32.mrf.mxu0
        %v656 = vpop.f32.mrf.mxu0
        %657 = vdwg.mxu0
        %658 = vmatprep.subr.bf16.mxu0 0
        %659 = vmatpush1.bf16.msra.mxu0 0
        %660 = vmatprep.subr.bf16.mxu0 0
        %661 = vmatpush1.bf16.msra.mxu0 0
        %662 = vmatprep.subr.bf16.mxu0 0
        %663 = vmatpush1.bf16.msra.mxu0 0
        %664 = vmatprep.subr.bf16.mxu0 0
        %665 = vmatpush1.bf16.msra.mxu0 0
        %666 = vmatprep.subr.bf16.mxu0 0
        %667 = vmatpush1.bf16.msra.mxu0 0
        %668 = vmatprep.subr.bf16.mxu0 0
        %669 = vmatpush1.bf16.msra.mxu0 0
        %670 = vmatprep.subr.bf16.mxu0 0
        %671 = vmatpush1.bf16.msra.mxu0 0
        %672 = vmatprep.subr.bf16.mxu0 0
        %673 = vmatpush1.bf16.msra.mxu0 %v615
        %674 = vmatprep.subr.bf16.mxu0 0
        %675 = vmatpush2.bf16.msra.mxu0 0
        %676 = vmatprep.subr.bf16.mxu0 0
        %677 = vmatpush2.bf16.msra.mxu0 0
        %678 = vmatprep.subr.bf16.mxu0 0
        %679 = vmatpush2.bf16.msra.mxu0 0
        %680 = vmatprep.subr.bf16.mxu0 0
        %681 = vmatpush2.bf16.msra.mxu0 0
        %682 = vmatprep.subr.bf16.mxu0 0
        %683 = vmatpush2.bf16.msra.mxu0 0
        %684 = vmatprep.subr.bf16.mxu0 0
        %685 = vmatpush2.bf16.msra.mxu0 0
        %686 = vmatprep.subr.bf16.mxu0 0
        %687 = vmatpush2.bf16.msra.mxu0 0
        %688 = vmatprep.subr.bf16.mxu0 0
        %689 = vmatpush2.bf16.msra.mxu0 0
        %690 = vmatprep.mubr.bf16.mxu0 0
        %691 = vmatmul.mubr.bf16.gmra.mxu0 %v606
        %v692 = vpop.f32.mrf.mxu0
        %v693 = vadd.f32 0.0, %v692
        %v694 = vpop.f32.mrf.mxu0
        %v695 = vpop.f32.mrf.mxu0
        %v696 = vpop.f32.mrf.mxu0
        %697 = vdwg.mxu0
        %v698 = vadd.f32 %v591, %v652
        %v699 = vadd.f32 %v592, %v654
        %v700 = vadd.f32 %v593, %v693
        %s701 = scalar_lea.vmem %s1, 20
        %v702 = vld [vmem:[%s701] sm:$0xf]
        %703 = vrot.lane.b32.xlu0 %v180, 108
        %v704 = vpop.permute.xlu0 %703
        %705 = vrot.lane.b32.xlu0 %v181, 108
        %v706 = vpop.permute.xlu0 %705
        %707 = vrot.lane.b32.xlu0 %v182, 108
        %v708 = vpop.permute.xlu0 %707
        %vm709 = vcmask 883712
        %v710 = vsel %vm709, %v704, %v706
        %v711 = vsel %vm709, %v706, %v708
        %v713 = vsel %vm192, %v702, 0
        %v716 = vsel %vm196, %v710, 0
        %v719 = vsel %vm196, %v711, 0
        %v722 = vsel %vm196, %v708, 0
        %724 = vmatprep.subr.bf16.mxu0 0
        %725 = vmatpush1.bf16.msra.mxu0 0
        %726 = vmatprep.subr.bf16.mxu0 0
        %727 = vmatpush1.bf16.msra.mxu0 0
        %728 = vmatprep.subr.bf16.mxu0 0
        %729 = vmatpush1.bf16.msra.mxu0 0
        %730 = vmatprep.subr.bf16.mxu0 0
        %731 = vmatpush1.bf16.msra.mxu0 0
        %732 = vmatprep.subr.bf16.mxu0 0
        %733 = vmatpush1.bf16.msra.mxu0 0
        %734 = vmatprep.subr.bf16.mxu0 0
        %735 = vmatpush1.bf16.msra.mxu0 0
        %736 = vmatprep.subr.bf16.mxu0 0
        %737 = vmatpush1.bf16.msra.mxu0 0
        %738 = vmatprep.subr.bf16.mxu0 %v719
        %739 = vmatpush1.bf16.msra.mxu0 %v716
        %740 = vmatprep.subr.bf16.mxu0 0
        %741 = vmatpush2.bf16.msra.mxu0 0
        %742 = vmatprep.subr.bf16.mxu0 0
        %743 = vmatpush2.bf16.msra.mxu0 0
        %744 = vmatprep.subr.bf16.mxu0 0
        %745 = vmatpush2.bf16.msra.mxu0 0
        %746 = vmatprep.subr.bf16.mxu0 0
        %747 = vmatpush2.bf16.msra.mxu0 0
        %748 = vmatprep.subr.bf16.mxu0 0
        %749 = vmatpush2.bf16.msra.mxu0 0
        %750 = vmatprep.subr.bf16.mxu0 0
        %751 = vmatpush2.bf16.msra.mxu0 0
        %752 = vmatprep.subr.bf16.mxu0 0
        %753 = vmatpush2.bf16.msra.mxu0 0
        %754 = vmatprep.subr.bf16.mxu0 0
        %755 = vmatpush2.bf16.msra.mxu0 0
        %756 = vmatprep.mubr.bf16.mxu0 0
        %757 = vmatmul.mubr.bf16.gmra.mxu0 %v713
        %v758 = vpop.f32.mrf.mxu0
        %v759 = vadd.f32 0.0, %v758
        %v760 = vpop.f32.mrf.mxu0
        %v761 = vadd.f32 0.0, %v760
        %v762 = vpop.f32.mrf.mxu0
        %v763 = vpop.f32.mrf.mxu0
        %764 = vdwg.mxu0
        %765 = vmatprep.subr.bf16.mxu0 0
        %766 = vmatpush1.bf16.msra.mxu0 0
        %767 = vmatprep.subr.bf16.mxu0 0
        %768 = vmatpush1.bf16.msra.mxu0 0
        %769 = vmatprep.subr.bf16.mxu0 0
        %770 = vmatpush1.bf16.msra.mxu0 0
        %771 = vmatprep.subr.bf16.mxu0 0
        %772 = vmatpush1.bf16.msra.mxu0 0
        %773 = vmatprep.subr.bf16.mxu0 0
        %774 = vmatpush1.bf16.msra.mxu0 0
        %775 = vmatprep.subr.bf16.mxu0 0
        %776 = vmatpush1.bf16.msra.mxu0 0
        %777 = vmatprep.subr.bf16.mxu0 0
        %778 = vmatpush1.bf16.msra.mxu0 0
        %779 = vmatprep.subr.bf16.mxu0 0
        %780 = vmatpush1.bf16.msra.mxu0 %v722
        %781 = vmatprep.subr.bf16.mxu0 0
        %782 = vmatpush2.bf16.msra.mxu0 0
        %783 = vmatprep.subr.bf16.mxu0 0
        %784 = vmatpush2.bf16.msra.mxu0 0
        %785 = vmatprep.subr.bf16.mxu0 0
        %786 = vmatpush2.bf16.msra.mxu0 0
        %787 = vmatprep.subr.bf16.mxu0 0
        %788 = vmatpush2.bf16.msra.mxu0 0
        %789 = vmatprep.subr.bf16.mxu0 0
        %790 = vmatpush2.bf16.msra.mxu0 0
        %791 = vmatprep.subr.bf16.mxu0 0
        %792 = vmatpush2.bf16.msra.mxu0 0
        %793 = vmatprep.subr.bf16.mxu0 0
        %794 = vmatpush2.bf16.msra.mxu0 0
        %795 = vmatprep.subr.bf16.mxu0 0
        %796 = vmatpush2.bf16.msra.mxu0 0
        %797 = vmatprep.mubr.bf16.mxu0 0
        %798 = vmatmul.mubr.bf16.gmra.mxu0 %v713
        %v799 = vpop.f32.mrf.mxu0
        %v800 = vadd.f32 0.0, %v799
        %v801 = vpop.f32.mrf.mxu0
        %v802 = vpop.f32.mrf.mxu0
        %v803 = vpop.f32.mrf.mxu0
        %804 = vdwg.mxu0
        %v805 = vadd.f32 %v698, %v759
        %v806 = vadd.f32 %v699, %v761
        %v807 = vadd.f32 %v700, %v800
        %s808 = scalar_lea.vmem %s1, 24
        %v809 = vld [vmem:[%s808] sm:$0xf]
        %810 = vrot.lane.b32.xlu0 %v180, 92
        %v811 = vpop.permute.xlu0 %810
        %812 = vrot.lane.b32.xlu0 %v181, 92
        %v813 = vpop.permute.xlu0 %812
        %814 = vrot.lane.b32.xlu0 %v182, 92
        %v815 = vpop.permute.xlu0 %814
        %vm816 = vcmask 752640
        %v817 = vsel %vm816, %v811, %v813
        %v818 = vsel %vm816, %v813, %v815
        %v820 = vsel %vm192, %v809, 0
        %v823 = vsel %vm196, %v817, 0
        %v826 = vsel %vm196, %v818, 0
        %v829 = vsel %vm196, %v815, 0
        %831 = vmatprep.subr.bf16.mxu0 0
        %832 = vmatpush1.bf16.msra.mxu0 0
        %833 = vmatprep.subr.bf16.mxu0 0
        %834 = vmatpush1.bf16.msra.mxu0 0
        %835 = vmatprep.subr.bf16.mxu0 0
        %836 = vmatpush1.bf16.msra.mxu0 0
        %837 = vmatprep.subr.bf16.mxu0 0
        %838 = vmatpush1.bf16.msra.mxu0 0
        %839 = vmatprep.subr.bf16.mxu0 0
        %840 = vmatpush1.bf16.msra.mxu0 0
        %841 = vmatprep.subr.bf16.mxu0 0
        %842 = vmatpush1.bf16.msra.mxu0 0
        %843 = vmatprep.subr.bf16.mxu0 0
        %844 = vmatpush1.bf16.msra.mxu0 0
        %845 = vmatprep.subr.bf16.mxu0 %v826
        %846 = vmatpush1.bf16.msra.mxu0 %v823
        %847 = vmatprep.subr.bf16.mxu0 0
        %848 = vmatpush2.bf16.msra.mxu0 0
        %849 = vmatprep.subr.bf16.mxu0 0
        %850 = vmatpush2.bf16.msra.mxu0 0
        %851 = vmatprep.subr.bf16.mxu0 0
        %852 = vmatpush2.bf16.msra.mxu0 0
        %853 = vmatprep.subr.bf16.mxu0 0
        %854 = vmatpush2.bf16.msra.mxu0 0
        %855 = vmatprep.subr.bf16.mxu0 0
        %856 = vmatpush2.bf16.msra.mxu0 0
        %857 = vmatprep.subr.bf16.mxu0 0
        %858 = vmatpush2.bf16.msra.mxu0 0
        %859 = vmatprep.subr.bf16.mxu0 0
        %860 = vmatpush2.bf16.msra.mxu0 0
        %861 = vmatprep.subr.bf16.mxu0 0
        %862 = vmatpush2.bf16.msra.mxu0 0
        %863 = vmatprep.mubr.bf16.mxu0 0
        %864 = vmatmul.mubr.bf16.gmra.mxu0 %v820
        %v865 = vpop.f32.mrf.mxu0
        %v866 = vadd.f32 0.0, %v865
        %v867 = vpop.f32.mrf.mxu0
        %v868 = vadd.f32 0.0, %v867
        %v869 = vpop.f32.mrf.mxu0
        %v870 = vpop.f32.mrf.mxu0
        %871 = vdwg.mxu0
        %872 = vmatprep.subr.bf16.mxu0 0
        %873 = vmatpush1.bf16.msra.mxu0 0
        %874 = vmatprep.subr.bf16.mxu0 0
        %875 = vmatpush1.bf16.msra.mxu0 0
        %876 = vmatprep.subr.bf16.mxu0 0
        %877 = vmatpush1.bf16.msra.mxu0 0
        %878 = vmatprep.subr.bf16.mxu0 0
        %879 = vmatpush1.bf16.msra.mxu0 0
        %880 = vmatprep.subr.bf16.mxu0 0
        %881 = vmatpush1.bf16.msra.mxu0 0
        %882 = vmatprep.subr.bf16.mxu0 0
        %883 = vmatpush1.bf16.msra.mxu0 0
        %884 = vmatprep.subr.bf16.mxu0 0
        %885 = vmatpush1.bf16.msra.mxu0 0
        %886 = vmatprep.subr.bf16.mxu0 0
        %887 = vmatpush1.bf16.msra.mxu0 %v829
        %888 = vmatprep.subr.bf16.mxu0 0
        %889 = vmatpush2.bf16.msra.mxu0 0
        %890 = vmatprep.subr.bf16.mxu0 0
        %891 = vmatpush2.bf16.msra.mxu0 0
        %892 = vmatprep.subr.bf16.mxu0 0
        %893 = vmatpush2.bf16.msra.mxu0 0
        %894 = vmatprep.subr.bf16.mxu0 0
        %895 = vmatpush2.bf16.msra.mxu0 0
        %896 = vmatprep.subr.bf16.mxu0 0
        %897 = vmatpush2.bf16.msra.mxu0 0
        %898 = vmatprep.subr.bf16.mxu0 0
        %899 = vmatpush2.bf16.msra.mxu0 0
        %900 = vmatprep.subr.bf16.mxu0 0
        %901 = vmatpush2.bf16.msra.mxu0 0
        %902 = vmatprep.subr.bf16.mxu0 0
        %903 = vmatpush2.bf16.msra.mxu0 0
        %904 = vmatprep.mubr.bf16.mxu0 0
        %905 = vmatmul.mubr.bf16.gmra.mxu0 %v820
        %v906 = vpop.f32.mrf.mxu0
        %v907 = vadd.f32 0.0, %v906
        %v908 = vpop.f32.mrf.mxu0
        %v909 = vpop.f32.mrf.mxu0
        %v910 = vpop.f32.mrf.mxu0
        %911 = vdwg.mxu0
        %v912 = vadd.f32 %v805, %v866
        %v913 = vadd.f32 %v806, %v868
        %v914 = vadd.f32 %v807, %v907
        %s915 = scalar_lea.vmem %s1, 28
        %v916 = vld [vmem:[%s915] sm:$0xf]
        %917 = vrot.lane.b32.xlu0 %v180, 91
        %v918 = vpop.permute.xlu0 %917
        %919 = vrot.lane.b32.xlu0 %v181, 91
        %v920 = vpop.permute.xlu0 %919
        %921 = vrot.lane.b32.xlu0 %v182, 91
        %v922 = vpop.permute.xlu0 %921
        %vm923 = vcmask 744448
        %v924 = vsel %vm923, %v918, %v920
        %v925 = vsel %vm923, %v920, %v922
        %v927 = vsel %vm192, %v916, 0
        %v930 = vsel %vm196, %v924, 0
        %v933 = vsel %vm196, %v925, 0
        %v936 = vsel %vm196, %v922, 0
        %938 = vmatprep.subr.bf16.mxu0 0
        %939 = vmatpush1.bf16.msra.mxu0 0
        %940 = vmatprep.subr.bf16.mxu0 0
        %941 = vmatpush1.bf16.msra.mxu0 0
        %942 = vmatprep.subr.bf16.mxu0 0
        %943 = vmatpush1.bf16.msra.mxu0 0
        %944 = vmatprep.subr.bf16.mxu0 0
        %945 = vmatpush1.bf16.msra.mxu0 0
        %946 = vmatprep.subr.bf16.mxu0 0
        %947 = vmatpush1.bf16.msra.mxu0 0
        %948 = vmatprep.subr.bf16.mxu0 0
        %949 = vmatpush1.bf16.msra.mxu0 0
        %950 = vmatprep.subr.bf16.mxu0 0
        %951 = vmatpush1.bf16.msra.mxu0 0
        %952 = vmatprep.subr.bf16.mxu0 %v933
        %953 = vmatpush1.bf16.msra.mxu0 %v930
        %954 = vmatprep.subr.bf16.mxu0 0
        %955 = vmatpush2.bf16.msra.mxu0 0
        %956 = vmatprep.subr.bf16.mxu0 0
        %957 = vmatpush2.bf16.msra.mxu0 0
        %958 = vmatprep.subr.bf16.mxu0 0
        %959 = vmatpush2.bf16.msra.mxu0 0
        %960 = vmatprep.subr.bf16.mxu0 0
        %961 = vmatpush2.bf16.msra.mxu0 0
        %962 = vmatprep.subr.bf16.mxu0 0
        %963 = vmatpush2.bf16.msra.mxu0 0
        %964 = vmatprep.subr.bf16.mxu0 0
        %965 = vmatpush2.bf16.msra.mxu0 0
        %966 = vmatprep.subr.bf16.mxu0 0
        %967 = vmatpush2.bf16.msra.mxu0 0
        %968 = vmatprep.subr.bf16.mxu0 0
        %969 = vmatpush2.bf16.msra.mxu0 0
        %970 = vmatprep.mubr.bf16.mxu0 0
        %971 = vmatmul.mubr.bf16.gmra.mxu0 %v927
        %v972 = vpop.f32.mrf.mxu0
        %v973 = vadd.f32 0.0, %v972
        %v974 = vpop.f32.mrf.mxu0
        %v975 = vadd.f32 0.0, %v974
        %v976 = vpop.f32.mrf.mxu0
        %v977 = vpop.f32.mrf.mxu0
        %978 = vdwg.mxu0
        %979 = vmatprep.subr.bf16.mxu0 0
        %980 = vmatpush1.bf16.msra.mxu0 0
        %981 = vmatprep.subr.bf16.mxu0 0
        %982 = vmatpush1.bf16.msra.mxu0 0
        %983 = vmatprep.subr.bf16.mxu0 0
        %984 = vmatpush1.bf16.msra.mxu0 0
        %985 = vmatprep.subr.bf16.mxu0 0
        %986 = vmatpush1.bf16.msra.mxu0 0
        %987 = vmatprep.subr.bf16.mxu0 0
        %988 = vmatpush1.bf16.msra.mxu0 0
        %989 = vmatprep.subr.bf16.mxu0 0
        %990 = vmatpush1.bf16.msra.mxu0 0
        %991 = vmatprep.subr.bf16.mxu0 0
        %992 = vmatpush1.bf16.msra.mxu0 0
        %993 = vmatprep.subr.bf16.mxu0 0
        %994 = vmatpush1.bf16.msra.mxu0 %v936
        %995 = vmatprep.subr.bf16.mxu0 0
        %996 = vmatpush2.bf16.msra.mxu0 0
        %997 = vmatprep.subr.bf16.mxu0 0
        %998 = vmatpush2.bf16.msra.mxu0 0
        %999 = vmatprep.subr.bf16.mxu0 0
        %1000 = vmatpush2.bf16.msra.mxu0 0
        %1001 = vmatprep.subr.bf16.mxu0 0
        %1002 = vmatpush2.bf16.msra.mxu0 0
        %1003 = vmatprep.subr.bf16.mxu0 0
        %1004 = vmatpush2.bf16.msra.mxu0 0
        %1005 = vmatprep.subr.bf16.mxu0 0
        %1006 = vmatpush2.bf16.msra.mxu0 0
        %1007 = vmatprep.subr.bf16.mxu0 0
        %1008 = vmatpush2.bf16.msra.mxu0 0
        %1009 = vmatprep.subr.bf16.mxu0 0
        %1010 = vmatpush2.bf16.msra.mxu0 0
        %1011 = vmatprep.mubr.bf16.mxu0 0
        %1012 = vmatmul.mubr.bf16.gmra.mxu0 %v927
        %v1013 = vpop.f32.mrf.mxu0
        %v1014 = vadd.f32 0.0, %v1013
        %v1015 = vpop.f32.mrf.mxu0
        %v1016 = vpop.f32.mrf.mxu0
        %v1017 = vpop.f32.mrf.mxu0
        %1018 = vdwg.mxu0
        %v1019 = vadd.f32 %v912, %v973
        %v1020 = vadd.f32 %v913, %v975
        %v1021 = vadd.f32 %v914, %v1014
        %s1022 = scalar_lea.vmem %s1, 32
        %v1023 = vld [vmem:[%s1022] sm:$0xf]
        %1024 = vrot.lane.b32.xlu0 %v180, 90
        %v1025 = vpop.permute.xlu0 %1024
        %1026 = vrot.lane.b32.xlu0 %v181, 90
        %v1027 = vpop.permute.xlu0 %1026
        %1028 = vrot.lane.b32.xlu0 %v182, 90
        %v1029 = vpop.permute.xlu0 %1028
        %vm1030 = vcmask 736256
        %v1031 = vsel %vm1030, %v1025, %v1027
        %v1032 = vsel %vm1030, %v1027, %v1029
        %v1034 = vsel %vm192, %v1023, 0
        %v1037 = vsel %vm196, %v1031, 0
        %v1040 = vsel %vm196, %v1032, 0
        %v1043 = vsel %vm196, %v1029, 0
        %1045 = vmatprep.subr.bf16.mxu0 0
        %1046 = vmatpush1.bf16.msra.mxu0 0
        %1047 = vmatprep.subr.bf16.mxu0 0
        %1048 = vmatpush1.bf16.msra.mxu0 0
        %1049 = vmatprep.subr.bf16.mxu0 0
        %1050 = vmatpush1.bf16.msra.mxu0 0
        %1051 = vmatprep.subr.bf16.mxu0 0
        %1052 = vmatpush1.bf16.msra.mxu0 0
        %1053 = vmatprep.subr.bf16.mxu0 0
        %1054 = vmatpush1.bf16.msra.mxu0 0
        %1055 = vmatprep.subr.bf16.mxu0 0
        %1056 = vmatpush1.bf16.msra.mxu0 0
        %1057 = vmatprep.subr.bf16.mxu0 0
        %1058 = vmatpush1.bf16.msra.mxu0 0
        %1059 = vmatprep.subr.bf16.mxu0 %v1040
        %1060 = vmatpush1.bf16.msra.mxu0 %v1037
        %1061 = vmatprep.subr.bf16.mxu0 0
        %1062 = vmatpush2.bf16.msra.mxu0 0
        %1063 = vmatprep.subr.bf16.mxu0 0
        %1064 = vmatpush2.bf16.msra.mxu0 0
        %1065 = vmatprep.subr.bf16.mxu0 0
        %1066 = vmatpush2.bf16.msra.mxu0 0
        %1067 = vmatprep.subr.bf16.mxu0 0
        %1068 = vmatpush2.bf16.msra.mxu0 0
        %1069 = vmatprep.subr.bf16.mxu0 0
        %1070 = vmatpush2.bf16.msra.mxu0 0
        %1071 = vmatprep.subr.bf16.mxu0 0
        %1072 = vmatpush2.bf16.msra.mxu0 0
        %1073 = vmatprep.subr.bf16.mxu0 0
        %1074 = vmatpush2.bf16.msra.mxu0 0
        %1075 = vmatprep.subr.bf16.mxu0 0
        %1076 = vmatpush2.bf16.msra.mxu0 0
        %1077 = vmatprep.mubr.bf16.mxu0 0
        %1078 = vmatmul.mubr.bf16.gmra.mxu0 %v1034
        %v1079 = vpop.f32.mrf.mxu0
        %v1080 = vadd.f32 0.0, %v1079
        %v1081 = vpop.f32.mrf.mxu0
        %v1082 = vadd.f32 0.0, %v1081
        %v1083 = vpop.f32.mrf.mxu0
        %v1084 = vpop.f32.mrf.mxu0
        %1085 = vdwg.mxu0
        %1086 = vmatprep.subr.bf16.mxu0 0
        %1087 = vmatpush1.bf16.msra.mxu0 0
        %1088 = vmatprep.subr.bf16.mxu0 0
        %1089 = vmatpush1.bf16.msra.mxu0 0
        %1090 = vmatprep.subr.bf16.mxu0 0
        %1091 = vmatpush1.bf16.msra.mxu0 0
        %1092 = vmatprep.subr.bf16.mxu0 0
        %1093 = vmatpush1.bf16.msra.mxu0 0
        %1094 = vmatprep.subr.bf16.mxu0 0
        %1095 = vmatpush1.bf16.msra.mxu0 0
        %1096 = vmatprep.subr.bf16.mxu0 0
        %1097 = vmatpush1.bf16.msra.mxu0 0
        %1098 = vmatprep.subr.bf16.mxu0 0
        %1099 = vmatpush1.bf16.msra.mxu0 0
        %1100 = vmatprep.subr.bf16.mxu0 0
        %1101 = vmatpush1.bf16.msra.mxu0 %v1043
        %1102 = vmatprep.subr.bf16.mxu0 0
        %1103 = vmatpush2.bf16.msra.mxu0 0
        %1104 = vmatprep.subr.bf16.mxu0 0
        %1105 = vmatpush2.bf16.msra.mxu0 0
        %1106 = vmatprep.subr.bf16.mxu0 0
        %1107 = vmatpush2.bf16.msra.mxu0 0
        %1108 = vmatprep.subr.bf16.mxu0 0
        %1109 = vmatpush2.bf16.msra.mxu0 0
        %1110 = vmatprep.subr.bf16.mxu0 0
        %1111 = vmatpush2.bf16.msra.mxu0 0
        %1112 = vmatprep.subr.bf16.mxu0 0
        %1113 = vmatpush2.bf16.msra.mxu0 0
        %1114 = vmatprep.subr.bf16.mxu0 0
        %1115 = vmatpush2.bf16.msra.mxu0 0
        %1116 = vmatprep.subr.bf16.mxu0 0
        %1117 = vmatpush2.bf16.msra.mxu0 0
        %1118 = vmatprep.mubr.bf16.mxu0 0
        %1119 = vmatmul.mubr.bf16.gmra.mxu0 %v1034
        %v1120 = vpop.f32.mrf.mxu0
        %v1121 = vadd.f32 0.0, %v1120
        %v1122 = vpop.f32.mrf.mxu0
        %v1123 = vpop.f32.mrf.mxu0
        %v1124 = vpop.f32.mrf.mxu0
        %1125 = vdwg.mxu0
        %v1126 = vadd.f32 %v1019, %v1080
        %v1127 = vadd.f32 %v1020, %v1082
        %v1128 = vadd.f32 %v1021, %v1121
        %v1129 = vld [vmem:[%s2] sm:$0xff]
        %1131 = vset.pattern.permute.xlu0 0
        %1132 = vperm.xlu0 %1131, %v1129
        %v1133 = vpop.permute.xlu0 %1132
        %v1135 = vadd.f32 %v1126, %v1133
        %v1136 = vadd.f32 %v1127, %v1133
        %v1137 = vadd.f32 %v1128, %v1133
        %1138 = vst [vmem:[%s163] sm:$0xff] %v1135
        %1139 = vst [vmem:[%s163 + $0x8] sm:$0xff] %v1136
        %vm1140 = vcmask 261120
        %1141 = vst.msk [vmem:[%s163 + $0x10] sm:$0xff] %vm1140, %v1137
        %s1142 = sand.u32 %s93, 1
        %s1143 = scalar_lea.sflag [#allocation3], %s1142
        %s1144 = sand.u32 %s93, 1
        %s1145 = smul.addr %s1144, 24
        %s1146 = scalar_lea.vmem [#allocation2], %s1145
        // Predicated region
        $region33: #{tpu_custom_call.1} parent=31 // pred_check
          %p1147 = pneg %p103
        $region34: #{tpu_custom_call.1} parent=31 // pred_check_branch
          %1149 = sbr.rel (%p1147) target = $region36
        $region35: #{tpu_custom_call.1} parent=31 // pred_region
          %s1151 = ssub.s32 384, 384
          %1152 = vsyncadd %s1143, %s1151
          %s1153 = smul.addr %s17, 3
          %s1154 = smul.addr %s1153, 128
          %s1155 = scalar_lea.hbm %s3, %s1154
          %s1157 = sshll.u32 %s1146, 4
          %s1158 = int_to_ptr.vmem [resolvable:$true] %s1157
          %1160 = dma.vmem_to_hbm [thread:$0]  %s1158, 384, %s1155, %s1143
        $region36: #{tpu_custom_call.1} parent=31 // pred_fallthru
          _
      $region32: #{tpu_custom_call.1} parent=5 // pred_fallthru
        _
      %p1161 = scmp.le.s32.totalorder 2, %s12
      // Predicated region
      $region37: #{tpu_custom_call.1} parent=5 // pred_check
        %p1162 = pneg %p1161
      $region38: #{tpu_custom_call.1} parent=5 // pred_check_branch
        %1164 = sbr.rel (%p1162) target = $region40
      $region39: #{tpu_custom_call.1} parent=5 // pred_region
        %s1165 = ssub.s32 %s12, 2
        // Predicated region
        $region41: #{tpu_custom_call.1} parent=39 // pred_check
          %p1166 = pneg %p109
        $region42: #{tpu_custom_call.1} parent=39 // pred_check_branch
          %1168 = sbr.rel (%p1166) target = $region44
        $region43: #{tpu_custom_call.1} parent=39 // pred_region
          %s1169 = sand.u32 %s94, 1
          %s1170 = scalar_lea.sflag [#allocation3], %s1169
          %s1171 = sand.u32 %s94, 1
          %s1172 = smul.addr %s1171, 24
          %s1173 = scalar_lea.vmem [#allocation2], %s1172
          %1174 = dma.done %s1170, 384
        $region44: #{tpu_custom_call.1} parent=39 // pred_fallthru
          _
      $region40: #{tpu_custom_call.1} parent=5 // pred_fallthru
        _
    $region6: #{tpu_custom_call.1} parent=1 // loop_footer
      %s16 = sadd.s32 1, %s12
    $region7: #{tpu_custom_call.1} parent=1 // loop_footer_branch
      %11 = sbr.rel target = $region3
    $region8: #{tpu_custom_call.1} parent=1 // loop_exit
      _
    %1175 = vsyncpa [#allocation3], 1
    %s1176 = scalar_lea.sflag [#allocation3], 1
    %1177 = vsyncpa %s1176, 1

</llo_original>
